<compile_context>
chip_gen: v5e
topology: v5e:2x2
jax: 0.10.0
libtpu: 0.0.40
codegen_flags: <defaults>
</compile_context>

<pallas_src>
import functools
import math

import jax
import jax.numpy as jnp
from jax.experimental import pallas as pl
from jax.experimental.pallas import tpu as pltpu


def _round_up(x, m):
    return (x + m - 1) // m * m


# --------------------------------------------------------------------------- #
# Kernel 1: normalize rows once, fold in 1/sqrt(T), cast to matmul dtype.
# --------------------------------------------------------------------------- #
def _normalize_kernel(x_ref, o_ref, *, inv_sqrt_t):
    x = x_ref[...].astype(jnp.float32)                       # (BR, D)
    # F.normalize(p=2, dim=1): x / max(||x||, 1e-12) == x * rsqrt(max(||x||^2, 1e-24))
    sq = jnp.sum(x * x, axis=1, keepdims=True)
    scale = jax.lax.rsqrt(jnp.maximum(sq, 1e-24)) * inv_sqrt_t
    o_ref[...] = (x * scale).astype(o_ref.dtype)


# --------------------------------------------------------------------------- #
# Kernel 2: row-block x col-block loss with online logsumexp.
# --------------------------------------------------------------------------- #
def _loss_kernel(q_ref, k_ref, out_ref, m_sc, l_sc, t_sc, *,
                 n_valid, n_even, block_rows, block_cols):
    i = pl.program_id(0)      # query-row block
    j = pl.program_id(1)      # key-column block

    @pl.when(j == 0)
    def _():
        m_sc[...] = jnp.full(m_sc.shape, -jnp.inf, m_sc.dtype)
        l_sc[...] = jnp.zeros(l_sc.shape, l_sc.dtype)
        t_sc[...] = jnp.zeros(t_sc.shape, t_sc.dtype)

    q = q_ref[...]            # (BR, D) normalized * 1/sqrt(T), matmul dtype
    k = k_ref[...]            # (BC, D)

    # (BR, BC) logits on the MXU; contraction on last dims avoids a transpose.
    # 1/T is already folded into both operands.
    sim = jax.lax.dot_general(
        q, k, dimension_numbers=(((1,), (1,)), ((), ())),
        preferred_element_type=jnp.float32)

    row_l = jax.lax.broadcasted_iota(jnp.int32, sim.shape, 0)
    col_l = jax.lax.broadcasted_iota(jnp.int32, sim.shape, 1)
    row = row_l + i * block_rows                # global query-row index
    col = col_l + j * block_cols                # global key-column index

    # mask self-similarity (diagonal) and padded key columns
    sim = jnp.where(jnp.logical_or(row == col, col >= n_valid), -jnp.inf, sim)

    # ---- online logsumexp update ----
    m_prev = m_sc[...]                                          # (BR, 1)
    m_new = jnp.maximum(m_prev, jnp.max(sim, axis=1, keepdims=True))
    alpha = jnp.exp(m_prev - m_new)
    l_sc[...] = alpha * l_sc[...] + jnp.sum(jnp.exp(sim - m_new),
                                            axis=1, keepdims=True)
    m_sc[...] = m_new

    # ---- accumulate the target logit (each target falls in exactly one tile) ----
    # even N: pair-swapped arange targets; odd N: plain arange (masked diagonal,
    # faithfully reproducing PyTorch's -inf / +inf loss).
    if n_even:
        tgt = row + 1 - 2 * (row % 2)
    else:
        tgt = row
    t_sc[...] += jnp.sum(jnp.where(col == tgt, sim, 0.0), axis=1, keepdims=True)

    # ---- finalize this row block on the last column tile ----
    @pl.when(j == pl.num_programs(1) - 1)
    def _():
        log_probs = t_sc[...] - m_sc[...] - jnp.log(l_sc[...])   # (BR, 1)
        row_ids = i * block_rows + jax.lax.broadcasted_iota(
            jnp.int32, log_probs.shape, 0)
        valid = row_ids < n_valid                # drop zero-padded query rows
        partial = -jnp.sum(jnp.where(valid, log_probs, 0.0))
        out_ref[...] = partial.reshape(1, 1, 1)


# --------------------------------------------------------------------------- #
# Wrapper
# --------------------------------------------------------------------------- #
def contrastive_loss(embeddings, temperature=0.05, *,
                     block_rows=None, block_cols=None,
                     matmul_dtype=jnp.bfloat16,
                     key_resident_bytes=4 * 1024 * 1024):
    n, d = embeddings.shape
    out_isz = jnp.dtype(matmul_dtype).itemsize
    in_isz = jnp.dtype(embeddings.dtype).itemsize

    # ---- tile geometry -----------------------------------------------------
    if block_rows is None:
        block_rows = min(256, _round_up(n, 8))
    block_rows = max(8, _round_up(int(block_rows), 8))
    n_pad0 = _round_up(n, block_rows)

    if block_cols is None:
        if n_pad0 * d * out_isz <= key_resident_bytes:
            block_cols = n_pad0          # resident keys: one tile, one DMA total
        else:
            block_cols = min(512, n_pad0)  # flash-style column tiles for large N
    block_cols = max(8, _round_up(int(block_cols), 8))

    step = (block_rows * block_cols) // math.gcd(block_rows, block_cols)
    n_pad = _round_up(n, step)
    num_row_blocks = n_pad // block_rows
    num_col_blocks = n_pad // block_cols

    emb = embeddings
    if n_pad != n:
        emb = jnp.pad(emb, ((0, n_pad - n), (0, 0)))   # zero rows -> zero after normalize

    inv_sqrt_t = 1.0 / math.sqrt(float(temperature))

    # ---- kernel 1: normalize once ------------------------------------------
    norm_vmem = int(min(max(4 * block_rows * d * (in_isz + out_isz) + (1 << 20),
                            16 * 1024 * 1024), 56 * 1024 * 1024))
    normed = pl.pallas_call(
        functools.partial(_normalize_kernel, inv_sqrt_t=inv_sqrt_t),
        out_shape=jax.ShapeDtypeStruct((n_pad, d), matmul_dtype),
        grid=(num_row_blocks,),
        in_specs=[pl.BlockSpec((block_rows, d), lambda i: (i, 0))],
        out_specs=pl.BlockSpec((block_rows, d), lambda i: (i, 0)),
        compiler_params=pltpu.CompilerParams(
            dimension_semantics=("parallel",),
            vmem_limit_bytes=norm_vmem),
    )(emb)

    # ---- kernel 2: blocked loss ---------------------------------------------
    loss_kernel = functools.partial(
        _loss_kernel, n_valid=n, n_even=(n % 2 == 0),
        block_rows=block_rows, block_cols=block_cols)

    cost = pl.CostEstimate(
        flops=int(2 * n_pad * n_pad * d),
        transcendentals=int(n_pad * n_pad),
        bytes_accessed=int((num_row_blocks * n_pad * d + n_pad * d) * out_isz
                           + num_row_blocks * 4))

    loss_vmem = int(min(max(
        2 * (2 * block_rows * d * out_isz          # q tiles (double-buffered)
             + 2 * block_cols * d * out_isz        # key tiles (double-buffered)
             + 4 * block_rows * block_cols * 4     # sim / exp temporaries
             + 3 * block_rows * 4) + (1 << 20),
        16 * 1024 * 1024), 56 * 1024 * 1024))

    partials = pl.pallas_call(
        loss_kernel,
        out_shape=jax.ShapeDtypeStruct((num_row_blocks, 1, 1), jnp.float32),
        grid=(num_row_blocks, num_col_blocks),
        in_specs=[
            pl.BlockSpec((block_rows, d), lambda i, j: (i, 0)),   # query rows
            pl.BlockSpec((block_cols, d), lambda i, j: (j, 0)),   # key columns
        ],
        out_specs=pl.BlockSpec((1, 1, 1), lambda i, j: (i, 0, 0)),
        scratch_shapes=[
            pltpu.VMEM((block_rows, 1), jnp.float32),   # running max
            pltpu.VMEM((block_rows, 1), jnp.float32),   # running denom
            pltpu.VMEM((block_rows, 1), jnp.float32),   # target logit
        ],
        compiler_params=pltpu.CompilerParams(
            dimension_semantics=("parallel", "arbitrary"),
            vmem_limit_bytes=loss_vmem),
        cost_estimate=cost,
    )(normed, normed)

    return jnp.sum(partials) / jnp.float32(n)


# --------------------------------------------------------------------------- #
# Pure-JAX reference mirroring the PyTorch forward
# --------------------------------------------------------------------------- #
def _reference_loss(embeddings, temperature=0.05):
    emb = embeddings.astype(jnp.float32)
    n = emb.shape[0]
    emb = emb / jnp.maximum(jnp.linalg.norm(emb, axis=1, keepdims=True), 1e-12)
    sim = (emb @ emb.T) / temperature
    sim = sim - jnp.max(sim, axis=1, keepdims=True)
    sim = jnp.where(jnp.eye(n, dtype=bool), -jnp.inf, sim)
    soft = jax.nn.softmax(sim, axis=1)
    tgt = jnp.arange(n)
    if n % 2 == 0:
        tgt = tgt + 1 - 2 * (tgt % 2)
    log_probs = jnp.log(soft[jnp.arange(n), tgt])
    return -jnp.mean(log_probs)


if __name__ == "__main__":
    key = jax.random.PRNGKey(0)
    k1, k2 = jax.random.split(key)
    D = 32
    emb8 = jax.random.normal(k1, (8, D), dtype=jnp.float32)    # even batch of 8
    emb10 = jax.random.normal(k2, (10, D), dtype=jnp.float32)  # ragged vs tiles

    # exact path (f32 MXU operands), tight tolerance
    loss_f32 = jax.block_until_ready(
        contrastive_loss(emb8, temperature=0.05, matmul_dtype=jnp.float32))
    ref8 = jax.block_until_ready(_reference_loss(emb8, temperature=0.05))
    assert jnp.allclose(loss_f32, ref8, rtol=1e-4, atol=1e-5), (loss_f32, ref8)

    # ragged N exercises the pad + mask path
    loss_ragged = jax.block_until_ready(
        contrastive_loss(emb10, temperature=0.05, matmul_dtype=jnp.float32))
    ref10 = jax.block_until_ready(_reference_loss(emb10, temperature=0.05))
    assert jnp.allclose(loss_ragged, ref10, rtol=1e-4, atol=1e-5), (loss_ragged, ref10)

    # default fast path (bf16 MXU operands), looser tolerance
    loss_bf16 = jax.block_until_ready(contrastive_loss(emb8, temperature=0.05))
    assert jnp.allclose(loss_bf16, ref8, rtol=5e-2, atol=1e-1), (loss_bf16, ref8)

    print("KERNEL_OK")
</pallas_src>

<mosaic_0001>
module attributes {stable_mosaic.version = 11 : i64} {
  func.func @_normalize_kernel(%arg0: i32, %arg1: memref<8x32xf32, #tpu.memory_space<vmem>>, %arg2: memref<8x32xf32, #tpu.memory_space<vmem>>) attributes {dimension_semantics = [#tpu.dimension_semantics<parallel>], iteration_bounds = array<i64: 1>, scalar_prefetch = 0 : i64, scratch_operands = 0 : i64, tpu.core_type = #tpu.core_type<tc>, window_params = [{transform_indices = @transform_0, window_bounds = array<i64: 8, 32>}, {transform_indices = @transform_1, window_bounds = array<i64: 8, 32>}]} {
    %c0 = arith.constant 0 : index
    %c0_0 = arith.constant 0 : index
    %0 = vector.load %arg1[%c0, %c0_0] : memref<8x32xf32, #tpu.memory_space<vmem>>, vector<8x32xf32>
    %1 = arith.mulf %0, %0 : vector<8x32xf32>
    %cst = arith.constant dense<0.000000e+00> : vector<8xf32>
    %2 = vector.multi_reduction <add>, %1, %cst [1] : vector<8x32xf32> to vector<8xf32>
    %3 = vector.shape_cast %2 : vector<8xf32> to vector<8x1xf32>
    %cst_1 = arith.constant 1.000000e-24 : f32
    %4 = vector.broadcast %cst_1 : f32 to vector<8x1xf32>
    %5 = arith.maximumf %3, %4 : vector<8x1xf32>
    %6 = math.rsqrt %5 : vector<8x1xf32>
    %cst_2 = arith.constant 4.47213602 : f32
    %7 = vector.broadcast %cst_2 : f32 to vector<8x1xf32>
    %8 = arith.mulf %6, %7 : vector<8x1xf32>
    %9 = vector.broadcast %8 : vector<8x1xf32> to vector<8x32xf32>
    %10 = arith.mulf %0, %9 : vector<8x32xf32>
    %c0_3 = arith.constant 0 : index
    %c0_4 = arith.constant 0 : index
    %11 = vector.load %arg2[%c0_3, %c0_4] : memref<8x32xf32, #tpu.memory_space<vmem>>, vector<8x32xf32>
    tpu.vector_store %arg2[%c0_3, %c0_4], %10 {strides = array<i32>} : memref<8x32xf32, #tpu.memory_space<vmem>>, vector<8x32xf32>,
    return
  }
  func.func @transform_0(%arg0: i32) -> (i32, i32) {
    %c0_i32 = arith.constant 0 : i32
    %c0_i32_0 = arith.constant 0 : i32
    return %arg0, %c0_i32 : i32, i32
  }
  func.func @transform_1(%arg0: i32) -> (i32, i32) {
    %c0_i32 = arith.constant 0 : i32
    %c0_i32_0 = arith.constant 0 : i32
    return %arg0, %c0_i32 : i32, i32
  }
}

</mosaic_0001>

<llo_original>
// kernel: tpu_custom_call.1
$region0: #{tpu_custom_call.1}
  #allocation0 [shape = 'u32[]', space=smem, size = 0x4, offset = 0x4, fixed_abs, tag = 'smem constant byte address 0x4 - core index']
  #allocation1 [shape = 'u32[72,128]{1,0:T(1,128)}', space=vmem, size = 0x9000, scoped, tag = 'internal scratch']
  %s0 = inlined_call_operand.hbm [shape: f32[8,32], index: 0, kind: input, shape index: {}]
  %s1 = inlined_call_operand.hbm [shape: f32[8,32], index: 1, kind: output, shape index: {}]
  %s2 = sld [smem:[#allocation0]]
  $region18: #{tpu_custom_call.1} parent=0
    _
  %s4 = ssub.s32 1, %s2
  %s5 = scalar_select 0, %s4, %s2
  $region1: #{tpu_custom_call.1} parent=0
    #allocation2 [shape = 'u8[4096]{0}', space=vmem, size = 0x1000, scoped, tag = 'input window, operand 0, single buffered']
    #allocation3 [shape = 's32[1]{0}', space=sflag, size = 0x4, scoped, tag = 'scoped memory for tpu_custom_call.1']
    #allocation4 [shape = 's32[1]{0}', space=sflag, size = 0x4, scoped, tag = 'scoped memory for tpu_custom_call.1']
    #allocation5 [shape = 'u8[4096]{0}', space=vmem, size = 0x1000, scoped, tag = 'output window, operand 0, single buffered']
    %6 = vsyncpa [#allocation3], 0
    %7 = vsyncpa [#allocation4], 0
    // Predicated region
    $region2: #{tpu_custom_call.1} parent=1 // pred_check
      _
    $region3: #{tpu_custom_call.1} parent=1 // pred_check_branch
      %9 = sbr.rel (0) target = $region5
    $region4: #{tpu_custom_call.1} parent=1 // pred_region
      %11 = vsyncadd [#allocation3], 0
      %s13 = sshll.u32 %s0, 4
      %s14 = int_to_ptr.hbm [resolvable:$true] %s13
      %s15 = sshll.u32 [#allocation2], 4
      %s16 = int_to_ptr.vmem [resolvable:$true] %s15
      %18 = dma.hbm_to_vmem [thread:$0]  %s14, 128, %s16, [#allocation3]
    $region5: #{tpu_custom_call.1} parent=1 // pred_fallthru
      _
    // Predicated region
    $region6: #{tpu_custom_call.1} parent=1 // pred_check
      _
    $region7: #{tpu_custom_call.1} parent=1 // pred_check_branch
      %20 = sbr.rel (0) target = $region9
    $region8: #{tpu_custom_call.1} parent=1 // pred_region
      %22 = dma.done [#allocation3], 128
    $region9: #{tpu_custom_call.1} parent=1 // pred_fallthru
      _
    %v23 = vld [vmem:[#allocation2] sm:$0xff]
    %v24 = vmul.f32 %v23, %v23
    %vm25 = vcmask 261120
    %v26 = vsel %vm25, %v24, 0.0
    %27 = vadd.xlane.f32.xlu0 %v26
    %v28 = vpop.xlane.xlu0 %27
    %v29 = vmax.f32 %v28, 1e-24
    %v30 = vrsqrt.pop %v29
    %v31 = vmul.f32 %v30, %v29
    %v32 = vmul.f32 %v31, %v30
    %v33 = vmul.f32 0.5, %v32
    %v34 = vsub.f32 1.5, %v33
    %v35 = vmul.f32 %v30, %v34
    %vm36 = vweird.f32 %v29
    %vm37 = vweird.f32 %v30
    %vm38 = vmor %vm36, %vm37
    %v39 = vsel %vm38, %v30, %v35
    %v40 = vmul.f32 %v39, 4.472136
    %v41 = vmul.f32 %v23, %v40
    %42 = vst.msk [vmem:[#allocation5] sm:$0xff] %vm25, %v41
    // Predicated region
    $region10: #{tpu_custom_call.1} parent=1 // pred_check
      _
    $region11: #{tpu_custom_call.1} parent=1 // pred_check_branch
      %44 = sbr.rel (0) target = $region13
    $region12: #{tpu_custom_call.1} parent=1 // pred_region
      %46 = vsyncadd [#allocation4], 0
      %s48 = sshll.u32 [#allocation5], 4
      %s49 = int_to_ptr.vmem [resolvable:$true] %s48
      %s50 = sshll.u32 %s1, 4
      %s51 = int_to_ptr.hbm [resolvable:$true] %s50
      %53 = dma.vmem_to_hbm [thread:$0]  %s49, 128, %s51, [#allocation4]
    $region13: #{tpu_custom_call.1} parent=1 // pred_fallthru
      _
    // Predicated region
    $region14: #{tpu_custom_call.1} parent=1 // pred_check
      _
    $region15: #{tpu_custom_call.1} parent=1 // pred_check_branch
      %55 = sbr.rel (0) target = $region17
    $region16: #{tpu_custom_call.1} parent=1 // pred_region
      %57 = dma.done [#allocation4], 128
    $region17: #{tpu_custom_call.1} parent=1 // pred_fallthru
      _
    %58 = vsyncpa [#allocation3], 1
    %59 = vsyncpa [#allocation4], 1

</llo_original>
